<compile_context>
chip_gen: v5e
topology: v5e:2x2
jax: 0.10.0
libtpu: 0.0.40
codegen_flags: <defaults>
</compile_context>

<pallas_src>
import jax
import jax.numpy as jnp
from jax.experimental import pallas as pl
from jax.experimental.pallas import tpu as pltpu


def value_nn_kernel(xT_ref, w1_ref, b1_ref, w2_ref, b2_ref, w3_ref, b3_ref,
                    out_ref):
    xT = xT_ref[...]                                          # (in, TILE_B)

    # fc1 + ReLU:  h1^T = W1 @ x^T + b1
    h1 = jnp.dot(w1_ref[...], xT, preferred_element_type=jnp.float32)
    h1 = jnp.maximum(h1 + b1_ref[...], 0.0)                   # (fc1, TILE_B)

    # fc2 + ReLU:  h2^T = W2 @ h1^T + b2
    h2 = jnp.dot(w2_ref[...], h1, preferred_element_type=jnp.float32)
    h2 = jnp.maximum(h2 + b2_ref[...], 0.0)                   # (fc2, TILE_B)

    # Value head (out_features == 1): VPU multiply + sublane reduce instead
    # of a 1-column MXU matmul; bias comes from SMEM as a scalar.
    v = jnp.sum(h2 * w3_ref[...], axis=0, keepdims=True)      # (1, TILE_B)
    out_ref[...] = v + b3_ref[0, 0]


def value_nn_forward(state, w1, b1, w2, b2, w3, b3, *, tile_b=512):
    """SAC value-network forward.

    state: (B, input_dims) f32
    w1: (fc1, input_dims), b1: (fc1, 1)     [PyTorch nn.Linear layout]
    w2: (fc2, fc1),        b2: (fc2, 1)
    w3: (fc2, 1),          b3: (1, 1)       [value head, weight as a column]
    returns: (B, 1) f32
    """
    B, input_dims = state.shape
    fc1 = w1.shape[0]
    fc2 = w2.shape[0]

    # Lane-dense batch tile: multiple of 128, capped at tile_b.
    if B >= tile_b:
        tile = tile_b
    else:
        tile = ((B + 127) // 128) * 128
    b_pad = pl.cdiv(B, tile) * tile
    grid = (b_pad // tile,)

    xT = state.T                                              # (in, B)
    if b_pad != B:
        xT = jnp.pad(xT, ((0, 0), (0, b_pad - B)))

    resident = lambda i: (0, 0)                               # weights stay put

    out = pl.pallas_call(
        value_nn_kernel,
        out_shape=jax.ShapeDtypeStruct((1, b_pad), jnp.float32),
        grid=grid,
        in_specs=[
            pl.BlockSpec((input_dims, tile), lambda i: (0, i)),   # state tile
            pl.BlockSpec((fc1, input_dims), resident),            # W1
            pl.BlockSpec((fc1, 1), resident),                     # b1
            pl.BlockSpec((fc2, fc1), resident),                   # W2
            pl.BlockSpec((fc2, 1), resident),                     # b2
            pl.BlockSpec((fc2, 1), resident),                     # w3 column
            pl.BlockSpec(memory_space=pltpu.MemorySpace.SMEM),    # b3 scalar
        ],
        out_specs=pl.BlockSpec((1, tile), lambda i: (0, i)),
        compiler_params=pltpu.CompilerParams(
            dimension_semantics=("parallel",)),
    )(xT, w1, b1, w2, b2, w3, b3)

    return out[:, :B].T                                       # (B, 1)


def init_params(key, input_dims, fc1_dims, fc2_dims):
    """Deterministic init mimicking nn.Linear default (uniform +-1/sqrt(fan_in)).

    Weights are stored in PyTorch (out_features, in_features) layout; biases
    as (out_features, 1) columns; the value-head weight as a (fc2, 1) column
    and its bias as a (1, 1) scalar.
    """
    ks = jax.random.split(key, 6)

    def lin(kw, kb, fan_in, fan_out):
        bound = 1.0 / jnp.sqrt(jnp.float32(fan_in))
        w = jax.random.uniform(kw, (fan_out, fan_in), jnp.float32, -bound, bound)
        b = jax.random.uniform(kb, (fan_out, 1), jnp.float32, -bound, bound)
        return w, b

    w1, b1 = lin(ks[0], ks[1], input_dims, fc1_dims)
    w2, b2 = lin(ks[2], ks[3], fc1_dims, fc2_dims)
    w3, b3 = lin(ks[4], ks[5], fc2_dims, 1)       # w3: (1, fc2), b3: (1, 1)
    return w1, b1, w2, b2, w3.T, b3               # value weight as column


def value_nn_ref(state, w1, b1, w2, b2, w3, b3):
    h1 = jnp.maximum(state @ w1.T + b1.T, 0.0)
    h2 = jnp.maximum(h1 @ w2.T + b2.T, 0.0)
    return h2 @ w3 + b3


if __name__ == "__main__":
    # Small shapes consistent with the module; B chosen so the demo exercises
    # a multi-step batch grid (tile_b=128 -> grid=(2,)).
    B, input_dims, fc1_dims, fc2_dims = 256, 16, 32, 32

    key = jax.random.PRNGKey(0)
    k_state, k_params = jax.random.split(key)

    state = jax.random.normal(k_state, (B, input_dims), dtype=jnp.float32)
    params = init_params(k_params, input_dims, fc1_dims, fc2_dims)

    value = value_nn_forward(state, *params, tile_b=128)
    value = jax.block_until_ready(value)

    # Correctness check against plain-JAX reference.
    ref = value_nn_ref(state, *params)
    assert value.shape == (B, 1)
    assert jnp.allclose(value, ref, atol=1e-4, rtol=1e-4), \
        float(jnp.max(jnp.abs(value - ref)))

    print("KERNEL_OK")
</pallas_src>

<mosaic_0001>
module attributes {stable_mosaic.version = 11 : i64} {
  func.func @value_nn_kernel(%arg0: i32, %arg1: memref<16x128xf32, #tpu.memory_space<vmem>>, %arg2: memref<32x16xf32, #tpu.memory_space<vmem>>, %arg3: memref<32x1xf32, #tpu.memory_space<vmem>>, %arg4: memref<32x32xf32, #tpu.memory_space<vmem>>, %arg5: memref<32x1xf32, #tpu.memory_space<vmem>>, %arg6: memref<32x1xf32, #tpu.memory_space<vmem>>, %arg7: memref<1x1xf32, #tpu.memory_space<smem>>, %arg8: memref<1x128xf32, #tpu.memory_space<vmem>>) attributes {dimension_semantics = [#tpu.dimension_semantics<parallel>], iteration_bounds = array<i64: 2>, scalar_prefetch = 0 : i64, scratch_operands = 0 : i64, tpu.core_type = #tpu.core_type<tc>, window_params = [{transform_indices = @transform_0, window_bounds = array<i64: 16, 128>}, {pipeline_mode = #tpu.pipeline_mode<synchronous>, transform_indices = @transform_1, window_bounds = array<i64: 32, 16>}, {pipeline_mode = #tpu.pipeline_mode<synchronous>, transform_indices = @transform_2, window_bounds = array<i64: 32, 1>}, {pipeline_mode = #tpu.pipeline_mode<synchronous>, transform_indices = @transform_3, window_bounds = array<i64: 32, 32>}, {pipeline_mode = #tpu.pipeline_mode<synchronous>, transform_indices = @transform_4, window_bounds = array<i64: 32, 1>}, {pipeline_mode = #tpu.pipeline_mode<synchronous>, transform_indices = @transform_5, window_bounds = array<i64: 32, 1>}, {transform_indices = @transform_6, window_bounds = array<i64: 1, 1>}, {transform_indices = @transform_7, window_bounds = array<i64: 1, 128>}]} {
    %c0 = arith.constant 0 : index
    %c0_0 = arith.constant 0 : index
    %0 = vector.load %arg1[%c0, %c0_0] : memref<16x128xf32, #tpu.memory_space<vmem>>, vector<16x128xf32>
    %c0_1 = arith.constant 0 : index
    %c0_2 = arith.constant 0 : index
    %1 = vector.load %arg2[%c0_1, %c0_2] : memref<32x16xf32, #tpu.memory_space<vmem>>, vector<32x16xf32>
    %cst = arith.constant dense<0.000000e+00> : vector<32x128xf32>
    %2 = tpu.matmul %1, %0, %cst {dimension_numbers = #tpu.dot_dimension_numbers<[1], [0], [0], [1], [0, 0, 1, 1], [], []>} : vector<32x16xf32>, vector<16x128xf32>, vector<32x128xf32> -> vector<32x128xf32>
    %c0_3 = arith.constant 0 : index
    %c0_4 = arith.constant 0 : index
    %3 = vector.load %arg3[%c0_3, %c0_4] : memref<32x1xf32, #tpu.memory_space<vmem>>, vector<32x1xf32>
    %4 = vector.broadcast %3 : vector<32x1xf32> to vector<32x128xf32>
    %5 = arith.addf %2, %4 : vector<32x128xf32>
    %cst_5 = arith.constant 0.000000e+00 : f32
    %6 = vector.broadcast %cst_5 : f32 to vector<32x128xf32>
    %7 = arith.maximumf %5, %6 : vector<32x128xf32>
    %c0_6 = arith.constant 0 : index
    %c0_7 = arith.constant 0 : index
    %8 = vector.load %arg4[%c0_6, %c0_7] : memref<32x32xf32, #tpu.memory_space<vmem>>, vector<32x32xf32>
    %cst_8 = arith.constant dense<0.000000e+00> : vector<32x128xf32>
    %9 = tpu.matmul %8, %7, %cst_8 {dimension_numbers = #tpu.dot_dimension_numbers<[1], [0], [0], [1], [0, 0, 1, 1], [], []>} : vector<32x32xf32>, vector<32x128xf32>, vector<32x128xf32> -> vector<32x128xf32>
    %c0_9 = arith.constant 0 : index
    %c0_10 = arith.constant 0 : index
    %10 = vector.load %arg5[%c0_9, %c0_10] : memref<32x1xf32, #tpu.memory_space<vmem>>, vector<32x1xf32>
    %11 = vector.broadcast %10 : vector<32x1xf32> to vector<32x128xf32>
    %12 = arith.addf %9, %11 : vector<32x128xf32>
    %cst_11 = arith.constant 0.000000e+00 : f32
    %13 = vector.broadcast %cst_11 : f32 to vector<32x128xf32>
    %14 = arith.maximumf %12, %13 : vector<32x128xf32>
    %c0_12 = arith.constant 0 : index
    %c0_13 = arith.constant 0 : index
    %15 = vector.load %arg6[%c0_12, %c0_13] : memref<32x1xf32, #tpu.memory_space<vmem>>, vector<32x1xf32>
    %16 = vector.broadcast %15 : vector<32x1xf32> to vector<32x128xf32>
    %17 = arith.mulf %14, %16 : vector<32x128xf32>
    %cst_14 = arith.constant dense<0.000000e+00> : vector<128xf32>
    %18 = vector.multi_reduction <add>, %17, %cst_14 [0] : vector<32x128xf32> to vector<128xf32>
    %19 = vector.shape_cast %18 : vector<128xf32> to vector<1x128xf32>
    %c0_15 = arith.constant 0 : index
    %c0_16 = arith.constant 0 : index
    %20 = memref.load %arg7[%c0_15, %c0_16] : memref<1x1xf32, #tpu.memory_space<smem>>
    %21 = vector.broadcast %20 : f32 to vector<1x128xf32>
    %22 = arith.addf %19, %21 : vector<1x128xf32>
    %c0_17 = arith.constant 0 : index
    %c0_18 = arith.constant 0 : index
    %23 = vector.load %arg8[%c0_17, %c0_18] : memref<1x128xf32, #tpu.memory_space<vmem>>, vector<1x128xf32>
    tpu.vector_store %arg8[%c0_17, %c0_18], %22 {strides = array<i32>} : memref<1x128xf32, #tpu.memory_space<vmem>>, vector<1x128xf32>,
    return
  }
  func.func @transform_0(%arg0: i32) -> (i32, i32) {
    %c0_i32 = arith.constant 0 : i32
    %c0_i32_0 = arith.constant 0 : i32
    return %c0_i32, %arg0 : i32, i32
  }
  func.func @transform_1(%arg0: i32) -> (i32, i32) {
    %c0_i32 = arith.constant 0 : i32
    %c0_i32_0 = arith.constant 0 : i32
    %c0_i32_1 = arith.constant 0 : i32
    return %c0_i32, %c0_i32_0 : i32, i32
  }
  func.func @transform_2(%arg0: i32) -> (i32, i32) {
    %c0_i32 = arith.constant 0 : i32
    %c0_i32_0 = arith.constant 0 : i32
    %c0_i32_1 = arith.constant 0 : i32
    return %c0_i32, %c0_i32_0 : i32, i32
  }
  func.func @transform_3(%arg0: i32) -> (i32, i32) {
    %c0_i32 = arith.constant 0 : i32
    %c0_i32_0 = arith.constant 0 : i32
    %c0_i32_1 = arith.constant 0 : i32
    return %c0_i32, %c0_i32_0 : i32, i32
  }
  func.func @transform_4(%arg0: i32) -> (i32, i32) {
    %c0_i32 = arith.constant 0 : i32
    %c0_i32_0 = arith.constant 0 : i32
    %c0_i32_1 = arith.constant 0 : i32
    return %c0_i32, %c0_i32_0 : i32, i32
  }
  func.func @transform_5(%arg0: i32) -> (i32, i32) {
    %c0_i32 = arith.constant 0 : i32
    %c0_i32_0 = arith.constant 0 : i32
    %c0_i32_1 = arith.constant 0 : i32
    return %c0_i32, %c0_i32_0 : i32, i32
  }
  func.func @transform_6(%arg0: i32) -> (i32, i32) {
    %c0_i32 = arith.constant 0 : i32
    %c0_i32_0 = arith.constant 0 : i32
    %c0_i32_1 = arith.constant 0 : i32
    return %c0_i32, %c0_i32_0 : i32, i32
  }
  func.func @transform_7(%arg0: i32) -> (i32, i32) {
    %c0_i32 = arith.constant 0 : i32
    %c0_i32_0 = arith.constant 0 : i32
    return %c0_i32, %arg0 : i32, i32
  }
}

</mosaic_0001>

<llo_original>
// kernel: tpu_custom_call.1
$region0: #{tpu_custom_call.1}
  #allocation0 [shape = 'u32[]', space=smem, size = 0x4, offset = 0x4, fixed_abs, tag = 'smem constant byte address 0x4 - core index']
  #allocation1 [shape = 'u32[72,128]{1,0:T(1,128)}', space=vmem, size = 0x9000, scoped, tag = 'internal scratch']
  #allocation2 [shape = 'f32[1,1]{1,0:T(1,128)S(6)}', space=smem, size = 0x200, scoped, tag = 'scoped memory for tpu_custom_call.1']
  %s0 = inlined_call_operand.vmem [shape: f32[16,256], index: 0, kind: input, shape index: {}]
  %s1 = inlined_call_operand.vmem [shape: f32[32,16], index: 1, kind: input, shape index: {}]
  %s2 = inlined_call_operand.vmem [shape: f32[32,1], index: 2, kind: input, shape index: {}]
  %s3 = inlined_call_operand.vmem [shape: f32[32,32], index: 3, kind: input, shape index: {}]
  %s4 = inlined_call_operand.vmem [shape: f32[32,1], index: 4, kind: input, shape index: {}]
  %s5 = inlined_call_operand.vmem [shape: f32[32,1], index: 5, kind: input, shape index: {}]
  %s6 = inlined_call_operand.<no memory space> [shape: f32[1,1], index: 6, kind: input, shape index: {}]
  %s7 = inlined_call_operand.hbm [shape: f32[1,256], index: 7, kind: output, shape index: {}]
  %s8 = sld [smem:[#allocation0]]
  $region99: #{tpu_custom_call.1} parent=0
    _
  %s10 = ssub.s32 1, %s8
  %s11 = scalar_select 0, %s10, %s8
  %12 = sst [smem:[#allocation2]] %s6
  $region1: #{tpu_custom_call.1} parent=0
    #allocation3 [shape = 'u8[16384]{0}', space=vmem, size = 0x4000, scoped, tag = 'input window, operand 0']
    #allocation4 [shape = 'u8[1024]{0}', space=vmem, size = 0x400, scoped, tag = 'output window, operand 0']
    #allocation5 [shape = 's32[2]{0}', space=sflag, size = 0x8, scoped, tag = 'scoped memory for tpu_custom_call.1']
    %13 = vsyncpa [#allocation5], 0
    %s14 = scalar_lea.sflag [#allocation5], 1
    %15 = vsyncpa %s14, 0
    loop: start=0, step=1, limit=4
    $region2: #{tpu_custom_call.1} parent=1 // loop_pre_header
      _
    $region3: #{tpu_custom_call.1} parent=1 // loop_header
      %s17 = sphi 0, %s21
      %p18 = scmp.ge.s32.totalorder %s17, 4
      %s27 = sphi 0, %s29
      %s30 = sphi 0, %s27
      %s31 = sphi 0, %s30
      %s47 = sphi 0, %s31
      %s51 = sphi 0, %s51
      %s53 = sphi 0, %s51
      %s54 = sphi 0, %s53
      %s68 = sphi 0, %s54
      %s72 = sphi 0, %s72
      %s74 = sphi 0, %s72
      %s75 = sphi 0, %s74
      %s89 = sphi 0, %s75
      %s93 = sphi 0, %s93
      %s95 = sphi 0, %s93
      %s96 = sphi 0, %s95
      %s110 = sphi 0, %s96
      %s114 = sphi 0, %s114
      %s116 = sphi 0, %s114
      %s117 = sphi 0, %s116
      %s131 = sphi 0, %s117
      %s135 = sphi 0, %s135
      %s137 = sphi 0, %s135
      %s138 = sphi 0, %s137
      %s152 = sphi 0, %s138
      %s156 = sphi 0, %s156
      %s158 = sphi 0, %s156
      %s159 = sphi 0, %s158
      %s173 = sphi 0, %s159
      %s179 = sphi 0, %s181
      %s182 = sphi 0, %s179
      %s183 = sphi 0, %s182
      %s199 = sphi 0, %s183
    $region4: #{tpu_custom_call.1} parent=1 // loop_header_branch
      %20 = sbr.rel (%p18) target = $region8
    $region5: #{tpu_custom_call.1} parent=1 // loop_body
      %s22 = ssub.s32 %s17, 1
      %s23 = ssub.s32 %s17, 2
      %s24 = sadd.s32 %s17, 1
      %s25 = ssub.s32 %s17, %s24
      %p26 = scmp.eq.s32.totalorder %s25, 0
      %s28 = sadd.s32 %s27, 1
      %s29 = scalar_select %p26, %s27, %s28
      %p32 = pneg %p26
      %p33 = scmp.eq.s32.totalorder %s17, 1
      %p34 = por %p32, %p33
      %p35 = scmp.ne.s32.totalorder %s27, %s30
      %p36 = scmp.eq.s32.totalorder %s17, 0
      %p37 = por %p35, %p36
      %p38 = scmp.ne.s32.totalorder %s27, %s30
      %p39 = scmp.eq.s32.totalorder %s22, 1
      %p40 = por %p38, %p39
      %p41 = scmp.ne.s32.totalorder %s30, %s31
      %p42 = scmp.eq.s32.totalorder %s22, 0
      %p43 = por %p41, %p42
      %p44 = scmp.ne.s32.totalorder %s30, %s31
      %p45 = scmp.eq.s32.totalorder %s23, 1
      %p46 = por %p44, %p45
      %p48 = scmp.ne.s32.totalorder %s31, %s47
      %p49 = scmp.eq.s32.totalorder %s23, 0
      %p50 = por %p48, %p49
      %s52 = sadd.s32 %s51, 1
      %p55 = scmp.eq.s32.totalorder %s17, 1
      %p56 = scmp.ne.s32.totalorder %s51, %s53
      %p57 = scmp.eq.s32.totalorder %s17, 0
      %p58 = por %p56, %p57
      %p59 = scmp.ne.s32.totalorder %s51, %s53
      %p60 = scmp.eq.s32.totalorder %s22, 1
      %p61 = por %p59, %p60
      %p62 = scmp.ne.s32.totalorder %s53, %s54
      %p63 = scmp.eq.s32.totalorder %s22, 0
      %p64 = por %p62, %p63
      %p65 = scmp.ne.s32.totalorder %s53, %s54
      %p66 = scmp.eq.s32.totalorder %s23, 1
      %p67 = por %p65, %p66
      %p69 = scmp.ne.s32.totalorder %s54, %s68
      %p70 = scmp.eq.s32.totalorder %s23, 0
      %p71 = por %p69, %p70
      %s73 = sadd.s32 %s72, 1
      %p76 = scmp.eq.s32.totalorder %s17, 1
      %p77 = scmp.ne.s32.totalorder %s72, %s74
      %p78 = scmp.eq.s32.totalorder %s17, 0
      %p79 = por %p77, %p78
      %p80 = scmp.ne.s32.totalorder %s72, %s74
      %p81 = scmp.eq.s32.totalorder %s22, 1
      %p82 = por %p80, %p81
      %p83 = scmp.ne.s32.totalorder %s74, %s75
      %p84 = scmp.eq.s32.totalorder %s22, 0
      %p85 = por %p83, %p84
      %p86 = scmp.ne.s32.totalorder %s74, %s75
      %p87 = scmp.eq.s32.totalorder %s23, 1
      %p88 = por %p86, %p87
      %p90 = scmp.ne.s32.totalorder %s75, %s89
      %p91 = scmp.eq.s32.totalorder %s23, 0
      %p92 = por %p90, %p91
      %s94 = sadd.s32 %s93, 1
      %p97 = scmp.eq.s32.totalorder %s17, 1
      %p98 = scmp.ne.s32.totalorder %s93, %s95
      %p99 = scmp.eq.s32.totalorder %s17, 0
      %p100 = por %p98, %p99
      %p101 = scmp.ne.s32.totalorder %s93, %s95
      %p102 = scmp.eq.s32.totalorder %s22, 1
      %p103 = por %p101, %p102
      %p104 = scmp.ne.s32.totalorder %s95, %s96
      %p105 = scmp.eq.s32.totalorder %s22, 0
      %p106 = por %p104, %p105
      %p107 = scmp.ne.s32.totalorder %s95, %s96
      %p108 = scmp.eq.s32.totalorder %s23, 1
      %p109 = por %p107, %p108
      %p111 = scmp.ne.s32.totalorder %s96, %s110
      %p112 = scmp.eq.s32.totalorder %s23, 0
      %p113 = por %p111, %p112
      %s115 = sadd.s32 %s114, 1
      %p118 = scmp.eq.s32.totalorder %s17, 1
      %p119 = scmp.ne.s32.totalorder %s114, %s116
      %p120 = scmp.eq.s32.totalorder %s17, 0
      %p121 = por %p119, %p120
      %p122 = scmp.ne.s32.totalorder %s114, %s116
      %p123 = scmp.eq.s32.totalorder %s22, 1
      %p124 = por %p122, %p123
      %p125 = scmp.ne.s32.totalorder %s116, %s117
      %p126 = scmp.eq.s32.totalorder %s22, 0
      %p127 = por %p125, %p126
      %p128 = scmp.ne.s32.totalorder %s116, %s117
      %p129 = scmp.eq.s32.totalorder %s23, 1
      %p130 = por %p128, %p129
      %p132 = scmp.ne.s32.totalorder %s117, %s131
      %p133 = scmp.eq.s32.totalorder %s23, 0
      %p134 = por %p132, %p133
      %s136 = sadd.s32 %s135, 1
      %p139 = scmp.eq.s32.totalorder %s17, 1
      %p140 = scmp.ne.s32.totalorder %s135, %s137
      %p141 = scmp.eq.s32.totalorder %s17, 0
      %p142 = por %p140, %p141
      %p143 = scmp.ne.s32.totalorder %s135, %s137
      %p144 = scmp.eq.s32.totalorder %s22, 1
      %p145 = por %p143, %p144
      %p146 = scmp.ne.s32.totalorder %s137, %s138
      %p147 = scmp.eq.s32.totalorder %s22, 0
      %p148 = por %p146, %p147
      %p149 = scmp.ne.s32.totalorder %s137, %s138
      %p150 = scmp.eq.s32.totalorder %s23, 1
      %p151 = por %p149, %p150
      %p153 = scmp.ne.s32.totalorder %s138, %s152
      %p154 = scmp.eq.s32.totalorder %s23, 0
      %p155 = por %p153, %p154
      %s157 = sadd.s32 %s156, 1
      %p160 = scmp.eq.s32.totalorder %s17, 1
      %p161 = scmp.ne.s32.totalorder %s156, %s158
      %p162 = scmp.eq.s32.totalorder %s17, 0
      %p163 = por %p161, %p162
      %p164 = scmp.ne.s32.totalorder %s156, %s158
      %p165 = scmp.eq.s32.totalorder %s22, 1
      %p166 = por %p164, %p165
      %p167 = scmp.ne.s32.totalorder %s158, %s159
      %p168 = scmp.eq.s32.totalorder %s22, 0
      %p169 = por %p167, %p168
      %p170 = scmp.ne.s32.totalorder %s158, %s159
      %p171 = scmp.eq.s32.totalorder %s23, 1
      %p172 = por %p170, %p171
      %p174 = scmp.ne.s32.totalorder %s159, %s173
      %p175 = scmp.eq.s32.totalorder %s23, 0
      %p176 = por %p174, %p175
      %s177 = ssub.s32 %s17, %s24
      %p178 = scmp.eq.s32.totalorder %s177, 0
      %s180 = sadd.s32 %s179, 1
      %s181 = scalar_select %p178, %s179, %s180
      %p184 = pneg %p178
      %p185 = scmp.eq.s32.totalorder %s17, 1
      %p186 = por %p184, %p185
      %p187 = scmp.ne.s32.totalorder %s179, %s182
      %p188 = scmp.eq.s32.totalorder %s17, 0
      %p189 = por %p187, %p188
      %p190 = scmp.ne.s32.totalorder %s179, %s182
      %p191 = scmp.eq.s32.totalorder %s22, 1
      %p192 = por %p190, %p191
      %p193 = scmp.ne.s32.totalorder %s182, %s183
      %p194 = scmp.eq.s32.totalorder %s22, 0
      %p195 = por %p193, %p194
      %p196 = scmp.ne.s32.totalorder %s182, %s183
      %p197 = scmp.eq.s32.totalorder %s23, 1
      %p198 = por %p196, %p197
      %p200 = scmp.ne.s32.totalorder %s183, %s199
      %p201 = scmp.eq.s32.totalorder %s23, 0
      %p202 = por %p200, %p201
      %p203 = scmp.le.s32.totalorder 1, %s17
      %p204 = scmp.lt.s32.totalorder %s17, 3
      %p205 = pnand %p203, %p204
      %p206 = pneg %p205
      // Predicated region
      $region9: #{tpu_custom_call.1} parent=5 // pred_check
        _
      $region10: #{tpu_custom_call.1} parent=5 // pred_check_branch
        %208 = sbr.rel (%p205) target = $region12
      $region11: #{tpu_custom_call.1} parent=5 // pred_region
        %s209 = ssub.s32 %s17, 1
        // Predicated region
        $region13: #{tpu_custom_call.1} parent=11 // pred_check
          %p210 = pneg %p64
        $region14: #{tpu_custom_call.1} parent=11 // pred_check_branch
          %212 = sbr.rel (%p210) target = $region16
        $region15: #{tpu_custom_call.1} parent=11 // pred_region
          _
        $region16: #{tpu_custom_call.1} parent=11 // pred_fallthru
          _
        // Predicated region
        $region17: #{tpu_custom_call.1} parent=11 // pred_check
          %p213 = pneg %p85
        $region18: #{tpu_custom_call.1} parent=11 // pred_check_branch
          %215 = sbr.rel (%p213) target = $region20
        $region19: #{tpu_custom_call.1} parent=11 // pred_region
          _
        $region20: #{tpu_custom_call.1} parent=11 // pred_fallthru
          _
        // Predicated region
        $region21: #{tpu_custom_call.1} parent=11 // pred_check
          %p216 = pneg %p106
        $region22: #{tpu_custom_call.1} parent=11 // pred_check_branch
          %218 = sbr.rel (%p216) target = $region24
        $region23: #{tpu_custom_call.1} parent=11 // pred_region
          _
        $region24: #{tpu_custom_call.1} parent=11 // pred_fallthru
          _
        // Predicated region
        $region25: #{tpu_custom_call.1} parent=11 // pred_check
          %p219 = pneg %p127
        $region26: #{tpu_custom_call.1} parent=11 // pred_check_branch
          %221 = sbr.rel (%p219) target = $region28
        $region27: #{tpu_custom_call.1} parent=11 // pred_region
          _
        $region28: #{tpu_custom_call.1} parent=11 // pred_fallthru
          _
        // Predicated region
        $region29: #{tpu_custom_call.1} parent=11 // pred_check
          %p222 = pneg %p148
        $region30: #{tpu_custom_call.1} parent=11 // pred_check_branch
          %224 = sbr.rel (%p222) target = $region32
        $region31: #{tpu_custom_call.1} parent=11 // pred_region
          _
        $region32: #{tpu_custom_call.1} parent=11 // pred_fallthru
          _
        // Predicated region
        $region33: #{tpu_custom_call.1} parent=11 // pred_check
          %p225 = pneg %p169
        $region34: #{tpu_custom_call.1} parent=11 // pred_check_branch
          %227 = sbr.rel (%p225) target = $region36
        $region35: #{tpu_custom_call.1} parent=11 // pred_region
          _
        $region36: #{tpu_custom_call.1} parent=11 // pred_fallthru
          _
      $region12: #{tpu_custom_call.1} parent=5 // pred_fallthru
        _
      %p228 = scmp.lt.s32.totalorder %s17, 2
      // Predicated region
      $region37: #{tpu_custom_call.1} parent=5 // pred_check
        %p229 = pneg %p228
      $region38: #{tpu_custom_call.1} parent=5 // pred_check_branch
        %231 = sbr.rel (%p229) target = $region40
      $region39: #{tpu_custom_call.1} parent=5 // pred_region
        // Predicated region
        $region41: #{tpu_custom_call.1} parent=39 // pred_check
          %p232 = pneg %p37
        $region42: #{tpu_custom_call.1} parent=39 // pred_check_branch
          %234 = sbr.rel (%p232) target = $region44
        $region43: #{tpu_custom_call.1} parent=39 // pred_region
          %s235 = sand.u32 %s27, 1
          %s236 = sand.u32 %s27, 1
          %s237 = smul.addr %s236, 16
          %s238 = scalar_lea.vmem [#allocation3], %s237
          %s239 = smul.addr %s17, 8
          %s240 = scalar_lea.vmem %s0, %s239
          // Predicated region
          $region45: #{tpu_custom_call.1} parent=43 // pred_check
            _
          $region46: #{tpu_custom_call.1} parent=43 // pred_check_branch
            %242 = sbr.rel (0) target = $region48
          $region47: #{tpu_custom_call.1} parent=43 // pred_region
            // Predicated region
            $region49: #{tpu_custom_call.1} parent=47 // pred_check
              _
            $region50: #{tpu_custom_call.1} parent=47 // pred_check_branch
              %244 = sbr.rel (0) target = $region52
            $region51: #{tpu_custom_call.1} parent=47 // pred_region
              // Predicated region
              $region64: #{tpu_custom_call.1} parent=51 // pred_check
                _
              $region65: #{tpu_custom_call.1} parent=51 // pred_check_branch
                %262 = sbr.rel (0) target = $region67
              $region66: #{tpu_custom_call.1} parent=51 // pred_region
                loop: start=0, step=1, limit=1
                $region68: #{tpu_custom_call.1} parent=66 // loop_pre_header
                  _
                $region69: #{tpu_custom_call.1} parent=66 // loop_header
                  %s264 = sphi 0, %s268
                  %p265 = scmp.ge.s32.totalorder %s264, 1
                  %s269 = sphi %s240, %s240
                  %s270 = sphi %s238, %s238
                $region70: #{tpu_custom_call.1} parent=66 // loop_header_branch
                  %267 = sbr.rel (%p265) target = $region74
                $region71: #{tpu_custom_call.1} parent=66 // loop_body
                  %v271 = vld [vmem:[%s269] sm:$0xff]
                  %272 = vst [vmem:[%s270] sm:$0xff] %v271
                  %v273 = vld [vmem:[%s269 + $0x10] sm:$0xff]
                  %274 = vst [vmem:[%s270 + $0x8] sm:$0xff] %v273
                $region72: #{tpu_custom_call.1} parent=66 // loop_footer
                  %s268 = sadd.s32 1, %s264
                $region73: #{tpu_custom_call.1} parent=66 // loop_footer_branch
                  %263 = sbr.rel target = $region69
                $region74: #{tpu_custom_call.1} parent=66 // loop_exit
                  _
              $region67: #{tpu_custom_call.1} parent=51 // pred_fallthru
                _
              // Predicated region
              $region75: #{tpu_custom_call.1} parent=51 // pred_check
                _
              $region76: #{tpu_custom_call.1} parent=51 // pred_check_branch
                %276 = sbr.rel target = $region78
              $region77: #{tpu_custom_call.1} parent=51 // pred_region
                _
              $region78: #{tpu_custom_call.1} parent=51 // pred_fallthru
                _
            $region52: #{tpu_custom_call.1} parent=47 // pred_fallthru
              _
            // Predicated region
            $region53: #{tpu_custom_call.1} parent=47 // pred_check
              _
            $region54: #{tpu_custom_call.1} parent=47 // pred_check_branch
              %246 = sbr.rel target = $region56
            $region55: #{tpu_custom_call.1} parent=47 // pred_region
              %s248 = ssub.s32 256, 1
              loop: start=0, step=1, limit=1
              $region57: #{tpu_custom_call.1} parent=55 // loop_pre_header
                _
              $region58: #{tpu_custom_call.1} parent=55 // loop_header
                %s250 = sphi 0, %s254
                %p251 = scmp.ge.s32.totalorder %s250, 1
                %s255 = sphi %s240, %s240
                %s256 = sphi %s238, %s238
              $region59: #{tpu_custom_call.1} parent=55 // loop_header_branch
                %253 = sbr.rel (%p251) target = $region63
              $region60: #{tpu_custom_call.1} parent=55 // loop_body
                %v257 = vld [vmem:[%s255] sm:%s248]
                %258 = vst [vmem:[%s256] sm:%s248] %v257
                %v259 = vld [vmem:[%s255 + $0x10] sm:%s248]
                %260 = vst [vmem:[%s256 + $0x8] sm:%s248] %v259
              $region61: #{tpu_custom_call.1} parent=55 // loop_footer
                %s254 = sadd.s32 1, %s250
              $region62: #{tpu_custom_call.1} parent=55 // loop_footer_branch
                %249 = sbr.rel target = $region58
              $region63: #{tpu_custom_call.1} parent=55 // loop_exit
                _
            $region56: #{tpu_custom_call.1} parent=47 // pred_fallthru
              _
          $region48: #{tpu_custom_call.1} parent=43 // pred_fallthru
            _
          %277 = vnop
        $region44: #{tpu_custom_call.1} parent=39 // pred_fallthru
          _
      $region40: #{tpu_custom_call.1} parent=5 // pred_fallthru
        _
      %p278 = scmp.le.s32.totalorder 1, %s17
      %p279 = scmp.lt.s32.totalorder %s17, 3
      %p280 = pnand %p278, %p279
      %p281 = pneg %p280
      // Predicated region
      $region79: #{tpu_custom_call.1} parent=5 // pred_check
        _
      $region80: #{tpu_custom_call.1} parent=5 // pred_check_branch
        %283 = sbr.rel (%p280) target = $region82
      $region81: #{tpu_custom_call.1} parent=5 // pred_region
        %s284 = ssub.s32 %s17, 1
        %s285 = sand.u32 %s30, 1
        %s286 = sand.u32 %s30, 1
        %s287 = smul.addr %s286, 16
        %s288 = scalar_lea.vmem [#allocation3], %s287
        // Predicated region
        $region83: #{tpu_custom_call.1} parent=81 // pred_check
          %p289 = pneg %p43
        $region84: #{tpu_custom_call.1} parent=81 // pred_check_branch
          %291 = sbr.rel (%p289) target = $region86
        $region85: #{tpu_custom_call.1} parent=81 // pred_region
          _
        $region86: #{tpu_custom_call.1} parent=81 // pred_fallthru
          _
        %s292 = sand.u32 %s30, 1
        %s293 = sand.u32 %s30, 1
        %s294 = smul.addr %s293, 16
        %s295 = scalar_lea.vmem [#allocation3], %s294
        %p296 = pneg %p43
        %p297 = pneg %p40
        %p298 = pneg %p64
        %p299 = pneg %p61
        %p300 = pneg %p85
        %p301 = pneg %p82
        %p302 = pneg %p106
        %p303 = pneg %p103
        %p304 = pneg %p127
        %p305 = pneg %p124
        %p306 = pneg %p148
        %p307 = pneg %p145
        %p308 = pneg %p169
        %p309 = pneg %p166
        %p310 = pneg %p195
        %p311 = pneg %p192
        %s312 = sand.u32 %s182, 1
        %s313 = scalar_lea.sflag [#allocation5], %s312
        %s314 = sand.u32 %s182, 1
        %s315 = scalar_lea.vmem [#allocation4], %s314
        %v316 = vld [vmem:[%s288] sm:$0xff]
        %v317 = vld [vmem:[%s288 + $0x8] sm:$0xff]
        %v318 = vld [vmem:[%s1] sm:$0xff]
        %v319 = vld [vmem:[%s1 + $0x8] sm:$0xff]
        %v320 = vld [vmem:[%s1 + $0x10] sm:$0xff]
        %v321 = vld [vmem:[%s1 + $0x18] sm:$0xff]
        %v322 = vld [vmem:[%s2] sm:$0xff]
        %v323 = vld [vmem:[%s2 + $0x8] sm:$0xff]
        %v324 = vld [vmem:[%s2 + $0x10] sm:$0xff]
        %v325 = vld [vmem:[%s2 + $0x18] sm:$0xff]
        %327 = vset.pattern.permute.xlu0 0
        %328 = vperm.xlu0 %327, %v322
        %v329 = vpop.permute.xlu0 %328
        %332 = vset.pattern.permute.xlu0 0
        %333 = vperm.xlu0 %332, %v323
        %v334 = vpop.permute.xlu0 %333
        %337 = vset.pattern.permute.xlu0 0
        %338 = vperm.xlu0 %337, %v324
        %v339 = vpop.permute.xlu0 %338
        %342 = vset.pattern.permute.xlu0 0
        %343 = vperm.xlu0 %342, %v325
        %v344 = vpop.permute.xlu0 %343
        %vm346 = vcmask 130048
        %v348 = vsel %vm346, %v318, 0
        %v351 = vsel %vm346, %v319, 0
        %v354 = vsel %vm346, %v320, 0
        %v357 = vsel %vm346, %v321, 0
        %359 = vmatpush.msra.mxu0 0.0
        %360 = vmatpush.msra.mxu0 0.0
        %361 = vmatpush.msra.mxu0 0.0
        %362 = vmatpush.msra.mxu0 0.0
        %363 = vmatpush.msra.mxu0 0.0
        %364 = vmatpush.msra.mxu0 0.0
        %365 = vmatpush.msra.mxu0 0.0
        %366 = vmatpush.msra.mxu0 0.0
        %367 = vmatpush.msra.mxu0 0.0
        %368 = vmatpush.msra.mxu0 0.0
        %369 = vmatpush.msra.mxu0 0.0
        %370 = vmatpush.msra.mxu0 0.0
        %371 = vmatpush.msra.mxu0 0.0
        %372 = vmatpush.msra.mxu0 0.0
        %373 = vmatpush.msra.mxu0 %v317
        %374 = vmatpush.msra.mxu0 %v316
        %375 = vmatmul.f32.gmra.mxu0 %v348
        %v376 = vpop.f32.mrf.mxu0
        %v377 = vadd.f32 %v329, %v376
        %378 = vmatmul.f32.gmra.mxu0 %v351
        %v379 = vpop.f32.mrf.mxu0
        %v380 = vadd.f32 %v334, %v379
        %381 = vmatmul.f32.gmra.mxu0 %v354
        %v382 = vpop.f32.mrf.mxu0
        %v383 = vadd.f32 %v339, %v382
        %384 = vmatmul.f32.gmra.mxu0 %v357
        %v385 = vpop.f32.mrf.mxu0
        %v386 = vadd.f32 %v344, %v385
        %387 = vdwg.mxu0
        %v388 = vmax.f32 %v377, 0.0
        %v389 = vmax.f32 %v380, 0.0
        %v390 = vmax.f32 %v383, 0.0
        %v391 = vmax.f32 %v386, 0.0
        %v392 = vld [vmem:[%s3] sm:$0xff]
        %v393 = vld [vmem:[%s3 + $0x8] sm:$0xff]
        %v394 = vld [vmem:[%s3 + $0x10] sm:$0xff]
        %v395 = vld [vmem:[%s3 + $0x18] sm:$0xff]
        %v396 = vld [vmem:[%s4] sm:$0xff]
        %v397 = vld [vmem:[%s4 + $0x8] sm:$0xff]
        %v398 = vld [vmem:[%s4 + $0x10] sm:$0xff]
        %v399 = vld [vmem:[%s4 + $0x18] sm:$0xff]
        %401 = vset.pattern.permute.xlu0 0
        %402 = vperm.xlu0 %401, %v396
        %v403 = vpop.permute.xlu0 %402
        %406 = vset.pattern.permute.xlu0 0
        %407 = vperm.xlu0 %406, %v397
        %v408 = vpop.permute.xlu0 %407
        %411 = vset.pattern.permute.xlu0 0
        %412 = vperm.xlu0 %411, %v398
        %v413 = vpop.permute.xlu0 %412
        %416 = vset.pattern.permute.xlu0 0
        %417 = vperm.xlu0 %416, %v399
        %v418 = vpop.permute.xlu0 %417
        %vm420 = vcmask 261120
        %v422 = vsel %vm420, %v392, 0
        %v425 = vsel %vm420, %v393, 0
        %v428 = vsel %vm420, %v394, 0
        %v431 = vsel %vm420, %v395, 0
        %433 = vmatpush.msra.mxu0 0.0
        %434 = vmatpush.msra.mxu0 0.0
        %435 = vmatpush.msra.mxu0 0.0
        %436 = vmatpush.msra.mxu0 0.0
        %437 = vmatpush.msra.mxu0 0.0
        %438 = vmatpush.msra.mxu0 0.0
        %439 = vmatpush.msra.mxu0 0.0
        %440 = vmatpush.msra.mxu0 0.0
        %441 = vmatpush.msra.mxu0 0.0
        %442 = vmatpush.msra.mxu0 0.0
        %443 = vmatpush.msra.mxu0 0.0
        %444 = vmatpush.msra.mxu0 0.0
        %445 = vmatpush.msra.mxu0 %v391
        %446 = vmatpush.msra.mxu0 %v390
        %447 = vmatpush.msra.mxu0 %v389
        %448 = vmatpush.msra.mxu0 %v388
        %449 = vmatmul.f32.gmra.mxu0 %v422
        %v450 = vpop.f32.mrf.mxu0
        %v451 = vadd.f32 %v403, %v450
        %452 = vmatmul.f32.gmra.mxu0 %v425
        %v453 = vpop.f32.mrf.mxu0
        %v454 = vadd.f32 %v408, %v453
        %455 = vmatmul.f32.gmra.mxu0 %v428
        %v456 = vpop.f32.mrf.mxu0
        %v457 = vadd.f32 %v413, %v456
        %458 = vmatmul.f32.gmra.mxu0 %v431
        %v459 = vpop.f32.mrf.mxu0
        %v460 = vadd.f32 %v418, %v459
        %461 = vdwg.mxu0
        %v462 = vmax.f32 %v451, 0.0
        %v463 = vmax.f32 %v454, 0.0
        %v464 = vmax.f32 %v457, 0.0
        %v465 = vmax.f32 %v460, 0.0
        %v466 = vld [vmem:[%s5] sm:$0xff]
        %v467 = vld [vmem:[%s5 + $0x8] sm:$0xff]
        %v468 = vld [vmem:[%s5 + $0x10] sm:$0xff]
        %v469 = vld [vmem:[%s5 + $0x18] sm:$0xff]
        %471 = vset.pattern.permute.xlu0 0
        %472 = vperm.xlu0 %471, %v466
        %v473 = vpop.permute.xlu0 %472
        %476 = vset.pattern.permute.xlu0 0
        %477 = vperm.xlu0 %476, %v467
        %v478 = vpop.permute.xlu0 %477
        %481 = vset.pattern.permute.xlu0 0
        %482 = vperm.xlu0 %481, %v468
        %v483 = vpop.permute.xlu0 %482
        %486 = vset.pattern.permute.xlu0 0
        %487 = vperm.xlu0 %486, %v469
        %v488 = vpop.permute.xlu0 %487
        %v490 = vmul.f32 %v462, %v473
        %v491 = vmul.f32 %v463, %v478
        %v492 = vmul.f32 %v464, %v483
        %v493 = vmul.f32 %v465, %v488
        %v494 = vadd.f32 %v490, %v491
        %v495 = vadd.f32 %v494, %v492
        %v496 = vadd.f32 %v495, %v493
        %v497 = vrot.slane %v496, 4
        %v498 = vadd.f32 %v496, %v497
        %v499 = vrot.slane %v498, 2
        %v500 = vadd.f32 %v498, %v499
        %v501 = vrot.slane %v500, 1
        %v502 = vadd.f32 %v500, %v501
        %s503 = sld [smem:[#allocation2]]
        %v504 = vstv %s503
        %v505 = vadd.f32 %v502, %v504
        %506 = vst [vmem:[%s315] sm:$0x1] %v505
        %s507 = sand.u32 %s182, 1
        %s508 = scalar_lea.sflag [#allocation5], %s507
        %s509 = sand.u32 %s182, 1
        %s510 = scalar_lea.vmem [#allocation4], %s509
        // Predicated region
        $region87: #{tpu_custom_call.1} parent=81 // pred_check
          %p511 = pneg %p192
        $region88: #{tpu_custom_call.1} parent=81 // pred_check_branch
          %513 = sbr.rel (%p511) target = $region90
        $region89: #{tpu_custom_call.1} parent=81 // pred_region
          %515 = vsyncadd %s508, 0
          %s516 = scalar_lea.hbm %s7, %s22
          %s518 = sshll.u32 %s510, 4
          %s519 = int_to_ptr.vmem [resolvable:$true] %s518
          %s520 = sshll.u32 %s516, 4
          %s521 = int_to_ptr.hbm [resolvable:$true] %s520
          %523 = dma.vmem_to_hbm [thread:$0]  %s519, 16, %s521, %s508
        $region90: #{tpu_custom_call.1} parent=81 // pred_fallthru
          _
      $region82: #{tpu_custom_call.1} parent=5 // pred_fallthru
        _
      %p524 = scmp.le.s32.totalorder 2, %s17
      // Predicated region
      $region91: #{tpu_custom_call.1} parent=5 // pred_check
        %p525 = pneg %p524
      $region92: #{tpu_custom_call.1} parent=5 // pred_check_branch
        %527 = sbr.rel (%p525) target = $region94
      $region93: #{tpu_custom_call.1} parent=5 // pred_region
        %s528 = ssub.s32 %s17, 2
        // Predicated region
        $region95: #{tpu_custom_call.1} parent=93 // pred_check
          %p529 = pneg %p198
        $region96: #{tpu_custom_call.1} parent=93 // pred_check_branch
          %531 = sbr.rel (%p529) target = $region98
        $region97: #{tpu_custom_call.1} parent=93 // pred_region
          %s532 = sand.u32 %s183, 1
          %s533 = scalar_lea.sflag [#allocation5], %s532
          %s534 = sand.u32 %s183, 1
          %s535 = scalar_lea.vmem [#allocation4], %s534
          %537 = dma.done %s533, 16
        $region98: #{tpu_custom_call.1} parent=93 // pred_fallthru
          _
      $region94: #{tpu_custom_call.1} parent=5 // pred_fallthru
        _
    $region6: #{tpu_custom_call.1} parent=1 // loop_footer
      %s21 = sadd.s32 1, %s17
    $region7: #{tpu_custom_call.1} parent=1 // loop_footer_branch
      %16 = sbr.rel target = $region3
    $region8: #{tpu_custom_call.1} parent=1 // loop_exit
      _
    %538 = vsyncpa [#allocation5], 1
    %s539 = scalar_lea.sflag [#allocation5], 1
    %540 = vsyncpa %s539, 1

</llo_original>
